<compile_context>
chip_gen: v6e
topology: v6e:2x2x1
jax: 0.10.0
libtpu: 0.0.40
codegen_flags: <defaults>
</compile_context>

<pallas_src>
import jax
import jax.numpy as jnp
import numpy as np
from jax import lax
from jax.experimental import pallas as pl
from jax.experimental.pallas import tpu as pltpu

# ------------------------- problem sizes (small) ----------------------------
N, CIN, H, W = 2, 4, 16, 16
KH, KW = 3, 3
COUT = 32
NCLS = 10
KDIM = KH * KW * CIN          # 36   (im2col contraction dim)
M = N * H * W                 # 512  (batch*spatial folded into matmul M)


# ------------------------------ Pallas kernel -------------------------------
def extractor_head_kernel(p_ref, cw_ref, cb_ref, pool_ref, hw_ref, hb_ref,
                          out_ref):
    """Single grid step over the whole (tiny) problem.

    p_ref   : (M, KDIM)      im2col patch matrix (all batch elements)
    cw_ref  : (KDIM, COUT)   conv weights, pre-packed 2-D
    cb_ref  : (1, COUT)      conv bias
    pool_ref: (N, M)         block-diagonal GAP matrix (entries 1/(H*W))
    hw_ref  : (COUT, NCLS)   head (linear) weights
    hb_ref  : (1, NCLS)      head bias
    out_ref : (N, NCLS)      logits
    """
    # conv as one im2col matmul on the MXU, f32 accumulation
    conv = jnp.dot(p_ref[...], cw_ref[...],
                   preferred_element_type=jnp.float32)          # (M, COUT)
    # bias + ReLU (VPU, 2-D lane-dense operand)
    conv = jnp.maximum(conv + cb_ref[...], 0.0)
    # global average pool: block-diagonal pooling matmul (scale baked in)
    feat = jnp.dot(pool_ref[...], conv,
                   preferred_element_type=jnp.float32)          # (N, COUT)
    # linear head
    logits = jnp.dot(feat, hw_ref[...],
                     preferred_element_type=jnp.float32) + hb_ref[...]
    out_ref[...] = logits.astype(out_ref.dtype)                 # (N, NCLS)


# ------------------------------- wrapper -------------------------------------
@jax.jit
def extractor_head_forward(x_nchw, conv_w, conv_b, head_w, head_b):
    """x_nchw: [N, CIN, H, W] float32 (PyTorch layout). Returns [N, NCLS]."""
    # NCHW -> NHWC, zero-pad H/W by 1 (Conv2d padding=1), then im2col.
    x_nhwc = jnp.transpose(x_nchw, (0, 2, 3, 1))                 # (N,H,W,CIN)
    x_pad = jnp.pad(x_nhwc, ((0, 0), (1, 1), (1, 1), (0, 0)))    # (N,HP,WP,CIN)

    taps = [x_pad[:, kh:kh + H, kw:kw + W, :]                    # (N,H,W,CIN)
            for kh in range(KH) for kw in range(KW)]
    patches = jnp.concatenate(taps, axis=-1)                     # (N,H,W,KDIM)
    patches = patches.reshape(M, KDIM)                           # (M, KDIM)

    # pre-pack parameters to 2-D, lane-friendly shapes
    cw2 = conv_w.reshape(KDIM, COUT)                             # (36, 32)
    cb2 = conv_b.reshape(1, COUT)
    hb2 = head_b.reshape(1, NCLS)

    # constant block-diagonal pooling matrix: pool[i, j] = 1/(H*W) iff
    # j // (H*W) == i.  Constant-folded by XLA under jit.
    pool = jnp.repeat(jnp.eye(N, dtype=jnp.float32), H * W, axis=1)
    pool = pool * jnp.float32(1.0 / (H * W))                     # (N, M)

    flops = 2 * M * KDIM * COUT + 2 * N * M * COUT + 2 * N * COUT * NCLS \
        + 2 * M * COUT
    bytes_accessed = 4 * (M * KDIM + KDIM * COUT + COUT + N * M
                          + COUT * NCLS + NCLS + N * NCLS)

    return pl.pallas_call(
        extractor_head_kernel,
        out_shape=jax.ShapeDtypeStruct((N, NCLS), jnp.float32),
        grid_spec=pltpu.PrefetchScalarGridSpec(
            num_scalar_prefetch=0,
            grid=(1,),                                  # single grid step
            in_specs=[
                pl.BlockSpec((M, KDIM), lambda i: (0, 0)),
                pl.BlockSpec((KDIM, COUT), lambda i: (0, 0)),
                pl.BlockSpec((1, COUT), lambda i: (0, 0)),
                pl.BlockSpec((N, M), lambda i: (0, 0)),
                pl.BlockSpec((COUT, NCLS), lambda i: (0, 0)),
                pl.BlockSpec((1, NCLS), lambda i: (0, 0)),
            ],
            out_specs=pl.BlockSpec((N, NCLS), lambda i: (0, 0)),
        ),
        compiler_params=pltpu.CompilerParams(
            dimension_semantics=("arbitrary",)),
        cost_estimate=pl.CostEstimate(
            flops=flops, transcendentals=0, bytes_accessed=bytes_accessed),
    )(patches, cw2, cb2, pool, head_w, hb2)


# --------------------------- pure-JAX reference ------------------------------
def reference_forward(x_nchw, conv_w, conv_b, head_w, head_b):
    # conv_w is [KH, KW, CIN, COUT]; convert to torch layout [COUT, CIN, KH, KW]
    w_oihw = jnp.transpose(conv_w, (3, 2, 0, 1))
    y = lax.conv_general_dilated(
        x_nchw, w_oihw, window_strides=(1, 1), padding=((1, 1), (1, 1)),
        dimension_numbers=("NCHW", "OIHW", "NCHW"))
    y = y + conv_b.reshape(1, COUT, 1, 1)
    y = jnp.maximum(y, 0.0)
    feat = jnp.mean(y, axis=(2, 3))                      # (N, COUT)
    return feat @ head_w + head_b.reshape(1, NCLS)       # (N, NCLS)


# ---------------------------------- main -------------------------------------
if __name__ == "__main__":
    key = jax.random.PRNGKey(0)
    k_x, k_cw, k_cb, k_hw, k_hb = jax.random.split(key, 5)

    x = jax.random.normal(k_x, (N, CIN, H, W), dtype=jnp.float32)
    conv_w = jax.random.normal(k_cw, (KH, KW, CIN, COUT), jnp.float32) * 0.1
    conv_b = jax.random.normal(k_cb, (COUT,), jnp.float32) * 0.1
    head_w = jax.random.normal(k_hw, (COUT, NCLS), jnp.float32) * 0.1
    head_b = jax.random.normal(k_hb, (NCLS,), jnp.float32) * 0.1

    out = extractor_head_forward(x, conv_w, conv_b, head_w, head_b)
    out = jax.block_until_ready(out)

    ref = reference_forward(x, conv_w, conv_b, head_w, head_b)
    np.testing.assert_allclose(np.asarray(out), np.asarray(ref),
                               rtol=1e-4, atol=1e-4)
    print("KERNEL_OK")
</pallas_src>

<mosaic_0001>
module attributes {stable_mosaic.version = 11 : i64} {
  func.func @extractor_head_kernel(%arg0: i32, %arg1: memref<512x36xf32, #tpu.memory_space<vmem>>, %arg2: memref<36x32xf32, #tpu.memory_space<vmem>>, %arg3: memref<1x32xf32, #tpu.memory_space<vmem>>, %arg4: memref<2x512xf32, #tpu.memory_space<vmem>>, %arg5: memref<32x10xf32, #tpu.memory_space<vmem>>, %arg6: memref<1x10xf32, #tpu.memory_space<vmem>>, %arg7: memref<2x10xf32, #tpu.memory_space<vmem>>) attributes {dimension_semantics = [#tpu.dimension_semantics<arbitrary>], iteration_bounds = array<i64: 1>, scalar_prefetch = 0 : i64, scratch_operands = 0 : i64, tpu.core_type = #tpu.core_type<tc>, window_params = [{pipeline_mode = #tpu.pipeline_mode<synchronous>, transform_indices = @transform_0, window_bounds = array<i64: 512, 36>}, {pipeline_mode = #tpu.pipeline_mode<synchronous>, transform_indices = @transform_1, window_bounds = array<i64: 36, 32>}, {pipeline_mode = #tpu.pipeline_mode<synchronous>, transform_indices = @transform_2, window_bounds = array<i64: 1, 32>}, {pipeline_mode = #tpu.pipeline_mode<synchronous>, transform_indices = @transform_3, window_bounds = array<i64: 2, 512>}, {pipeline_mode = #tpu.pipeline_mode<synchronous>, transform_indices = @transform_4, window_bounds = array<i64: 32, 10>}, {pipeline_mode = #tpu.pipeline_mode<synchronous>, transform_indices = @transform_5, window_bounds = array<i64: 1, 10>}, {pipeline_mode = #tpu.pipeline_mode<synchronous>, transform_indices = @transform_6, window_bounds = array<i64: 2, 10>}]} {
    %c0 = arith.constant 0 : index
    %c0_0 = arith.constant 0 : index
    %0 = vector.load %arg1[%c0, %c0_0] : memref<512x36xf32, #tpu.memory_space<vmem>>, vector<512x36xf32>
    %c0_1 = arith.constant 0 : index
    %c0_2 = arith.constant 0 : index
    %1 = vector.load %arg2[%c0_1, %c0_2] : memref<36x32xf32, #tpu.memory_space<vmem>>, vector<36x32xf32>
    %cst = arith.constant dense<0.000000e+00> : vector<512x32xf32>
    %2 = tpu.matmul %0, %1, %cst {dimension_numbers = #tpu.dot_dimension_numbers<[1], [0], [0], [1], [0, 0, 1, 1], [], []>} : vector<512x36xf32>, vector<36x32xf32>, vector<512x32xf32> -> vector<512x32xf32>
    %c0_3 = arith.constant 0 : index
    %c0_4 = arith.constant 0 : index
    %3 = vector.load %arg3[%c0_3, %c0_4] : memref<1x32xf32, #tpu.memory_space<vmem>>, vector<1x32xf32>
    %4 = vector.broadcast %3 : vector<1x32xf32> to vector<512x32xf32>
    %5 = arith.addf %2, %4 : vector<512x32xf32>
    %cst_5 = arith.constant 0.000000e+00 : f32
    %6 = vector.broadcast %cst_5 : f32 to vector<512x32xf32>
    %7 = arith.maximumf %5, %6 : vector<512x32xf32>
    %c0_6 = arith.constant 0 : index
    %c0_7 = arith.constant 0 : index
    %8 = vector.load %arg4[%c0_6, %c0_7] : memref<2x512xf32, #tpu.memory_space<vmem>>, vector<2x512xf32>
    %cst_8 = arith.constant dense<0.000000e+00> : vector<2x32xf32>
    %9 = tpu.matmul %8, %7, %cst_8 {dimension_numbers = #tpu.dot_dimension_numbers<[1], [0], [0], [1], [0, 0, 1, 1], [], []>} : vector<2x512xf32>, vector<512x32xf32>, vector<2x32xf32> -> vector<2x32xf32>
    %c0_9 = arith.constant 0 : index
    %c0_10 = arith.constant 0 : index
    %10 = vector.load %arg5[%c0_9, %c0_10] : memref<32x10xf32, #tpu.memory_space<vmem>>, vector<32x10xf32>
    %cst_11 = arith.constant dense<0.000000e+00> : vector<2x10xf32>
    %11 = tpu.matmul %9, %10, %cst_11 {dimension_numbers = #tpu.dot_dimension_numbers<[1], [0], [0], [1], [0, 0, 1, 1], [], []>} : vector<2x32xf32>, vector<32x10xf32>, vector<2x10xf32> -> vector<2x10xf32>
    %c0_12 = arith.constant 0 : index
    %c0_13 = arith.constant 0 : index
    %12 = vector.load %arg6[%c0_12, %c0_13] : memref<1x10xf32, #tpu.memory_space<vmem>>, vector<1x10xf32>
    %13 = vector.broadcast %12 : vector<1x10xf32> to vector<2x10xf32>
    %14 = arith.addf %11, %13 : vector<2x10xf32>
    %c0_14 = arith.constant 0 : index
    %c0_15 = arith.constant 0 : index
    %15 = vector.load %arg7[%c0_14, %c0_15] : memref<2x10xf32, #tpu.memory_space<vmem>>, vector<2x10xf32>
    tpu.vector_store %arg7[%c0_14, %c0_15], %14 {strides = array<i32>} : memref<2x10xf32, #tpu.memory_space<vmem>>, vector<2x10xf32>,
    return
  }
  func.func @transform_0(%arg0: i32) -> (i32, i32) {
    %c0_i32 = arith.constant 0 : i32
    %c0_i32_0 = arith.constant 0 : i32
    %c0_i32_1 = arith.constant 0 : i32
    return %c0_i32, %c0_i32_0 : i32, i32
  }
  func.func @transform_1(%arg0: i32) -> (i32, i32) {
    %c0_i32 = arith.constant 0 : i32
    %c0_i32_0 = arith.constant 0 : i32
    %c0_i32_1 = arith.constant 0 : i32
    return %c0_i32, %c0_i32_0 : i32, i32
  }
  func.func @transform_2(%arg0: i32) -> (i32, i32) {
    %c0_i32 = arith.constant 0 : i32
    %c0_i32_0 = arith.constant 0 : i32
    %c0_i32_1 = arith.constant 0 : i32
    return %c0_i32, %c0_i32_0 : i32, i32
  }
  func.func @transform_3(%arg0: i32) -> (i32, i32) {
    %c0_i32 = arith.constant 0 : i32
    %c0_i32_0 = arith.constant 0 : i32
    %c0_i32_1 = arith.constant 0 : i32
    return %c0_i32, %c0_i32_0 : i32, i32
  }
  func.func @transform_4(%arg0: i32) -> (i32, i32) {
    %c0_i32 = arith.constant 0 : i32
    %c0_i32_0 = arith.constant 0 : i32
    %c0_i32_1 = arith.constant 0 : i32
    return %c0_i32, %c0_i32_0 : i32, i32
  }
  func.func @transform_5(%arg0: i32) -> (i32, i32) {
    %c0_i32 = arith.constant 0 : i32
    %c0_i32_0 = arith.constant 0 : i32
    %c0_i32_1 = arith.constant 0 : i32
    return %c0_i32, %c0_i32_0 : i32, i32
  }
  func.func @transform_6(%arg0: i32) -> (i32, i32) {
    %c0_i32 = arith.constant 0 : i32
    %c0_i32_0 = arith.constant 0 : i32
    %c0_i32_1 = arith.constant 0 : i32
    return %c0_i32, %c0_i32_0 : i32, i32
  }
}

</mosaic_0001>

<llo_original>
// kernel: extractor_head_forward.1
$region0: #{extractor_head_forward.1}
  #allocation0 [shape = 'u32[]', space=smem, size = 0x4, offset = 0x4, fixed_abs, tag = 'smem constant byte address 0x4 - core index']
  #allocation1 [shape = 'u32[144,128]{1,0:T(1,128)}', space=vmem, size = 0x12000, scoped, tag = 'internal scratch']
  %s0 = inlined_call_operand.vmem [shape: f32[512,36], index: 0, kind: input, shape index: {}]
  %s1 = inlined_call_operand.vmem [shape: f32[36,32], index: 1, kind: input, shape index: {}]
  %s2 = inlined_call_operand.vmem [shape: f32[1,32], index: 2, kind: input, shape index: {}]
  %s3 = inlined_call_operand.vmem [shape: f32[2,512], index: 3, kind: input, shape index: {}]
  %s4 = inlined_call_operand.vmem [shape: f32[32,10], index: 4, kind: input, shape index: {}]
  %s5 = inlined_call_operand.vmem [shape: f32[1,10], index: 5, kind: input, shape index: {}]
  %s6 = inlined_call_operand.hbm [shape: f32[2,10], index: 6, kind: output, shape index: {}]
  %s7 = sld [smem:[#allocation0]]
  $region34: #{extractor_head_forward.1} parent=0
    _
  %s9 = ssub.s32 1, %s7
  %s10 = scalar_select 0, %s9, %s7
  $region1: #{extractor_head_forward.1} parent=0
    #allocation2 [shape = 'u8[1024]{0}', space=vmem, size = 0x400, scoped, tag = 'output window, operand 0, single buffered']
    #allocation3 [shape = 's32[1]{0}', space=sflag, size = 0x4, scoped, tag = 'scoped memory for extractor_head_forward.1']
    %11 = vsyncpa [#allocation3], 0
    // Predicated region
    $region2: #{extractor_head_forward.1} parent=1 // pred_check
      _
    $region3: #{extractor_head_forward.1} parent=1 // pred_check_branch
      %13 = sbr.rel (0) target = $region5
    $region4: #{extractor_head_forward.1} parent=1 // pred_region
      _
    $region5: #{extractor_head_forward.1} parent=1 // pred_fallthru
      _
    // Predicated region
    $region6: #{extractor_head_forward.1} parent=1 // pred_check
      _
    $region7: #{extractor_head_forward.1} parent=1 // pred_check_branch
      %15 = sbr.rel (0) target = $region9
    $region8: #{extractor_head_forward.1} parent=1 // pred_region
      _
    $region9: #{extractor_head_forward.1} parent=1 // pred_fallthru
      _
    // Predicated region
    $region10: #{extractor_head_forward.1} parent=1 // pred_check
      _
    $region11: #{extractor_head_forward.1} parent=1 // pred_check_branch
      %17 = sbr.rel (0) target = $region13
    $region12: #{extractor_head_forward.1} parent=1 // pred_region
      _
    $region13: #{extractor_head_forward.1} parent=1 // pred_fallthru
      _
    // Predicated region
    $region14: #{extractor_head_forward.1} parent=1 // pred_check
      _
    $region15: #{extractor_head_forward.1} parent=1 // pred_check_branch
      %19 = sbr.rel (0) target = $region17
    $region16: #{extractor_head_forward.1} parent=1 // pred_region
      _
    $region17: #{extractor_head_forward.1} parent=1 // pred_fallthru
      _
    // Predicated region
    $region18: #{extractor_head_forward.1} parent=1 // pred_check
      _
    $region19: #{extractor_head_forward.1} parent=1 // pred_check_branch
      %21 = sbr.rel (0) target = $region21
    $region20: #{extractor_head_forward.1} parent=1 // pred_region
      _
    $region21: #{extractor_head_forward.1} parent=1 // pred_fallthru
      _
    // Predicated region
    $region22: #{extractor_head_forward.1} parent=1 // pred_check
      _
    $region23: #{extractor_head_forward.1} parent=1 // pred_check_branch
      %23 = sbr.rel (0) target = $region25
    $region24: #{extractor_head_forward.1} parent=1 // pred_region
      _
    $region25: #{extractor_head_forward.1} parent=1 // pred_fallthru
      _
    %v24 = vld [vmem:[%s0] sm:$0xff]
    %v25 = vld [vmem:[%s0 + $0x8] sm:$0xff]
    %v26 = vld [vmem:[%s0 + $0x10] sm:$0xff]
    %v27 = vld [vmem:[%s0 + $0x18] sm:$0xff]
    %v28 = vld [vmem:[%s0 + $0x20] sm:$0xff]
    %v29 = vld [vmem:[%s0 + $0x28] sm:$0xff]
    %v30 = vld [vmem:[%s0 + $0x30] sm:$0xff]
    %v31 = vld [vmem:[%s0 + $0x38] sm:$0xff]
    %v32 = vld [vmem:[%s0 + $0x40] sm:$0xff]
    %v33 = vld [vmem:[%s0 + $0x48] sm:$0xff]
    %v34 = vld [vmem:[%s0 + $0x50] sm:$0xff]
    %v35 = vld [vmem:[%s0 + $0x58] sm:$0xff]
    %v36 = vld [vmem:[%s0 + $0x60] sm:$0xff]
    %v37 = vld [vmem:[%s0 + $0x68] sm:$0xff]
    %v38 = vld [vmem:[%s0 + $0x70] sm:$0xff]
    %v39 = vld [vmem:[%s0 + $0x78] sm:$0xff]
    %v40 = vld [vmem:[%s0 + $0x80] sm:$0xff]
    %v41 = vld [vmem:[%s0 + $0x88] sm:$0xff]
    %v42 = vld [vmem:[%s0 + $0x90] sm:$0xff]
    %v43 = vld [vmem:[%s0 + $0x98] sm:$0xff]
    %v44 = vld [vmem:[%s0 + $0xa0] sm:$0xff]
    %v45 = vld [vmem:[%s0 + $0xa8] sm:$0xff]
    %v46 = vld [vmem:[%s0 + $0xb0] sm:$0xff]
    %v47 = vld [vmem:[%s0 + $0xb8] sm:$0xff]
    %v48 = vld [vmem:[%s0 + $0xc0] sm:$0xff]
    %v49 = vld [vmem:[%s0 + $0xc8] sm:$0xff]
    %v50 = vld [vmem:[%s0 + $0xd0] sm:$0xff]
    %v51 = vld [vmem:[%s0 + $0xd8] sm:$0xff]
    %v52 = vld [vmem:[%s0 + $0xe0] sm:$0xff]
    %v53 = vld [vmem:[%s0 + $0xe8] sm:$0xff]
    %v54 = vld [vmem:[%s0 + $0xf0] sm:$0xff]
    %v55 = vld [vmem:[%s0 + $0xf8] sm:$0xff]
    %v56 = vld [vmem:[%s0 + $0x100] sm:$0xff]
    %v57 = vld [vmem:[%s0 + $0x108] sm:$0xff]
    %v58 = vld [vmem:[%s0 + $0x110] sm:$0xff]
    %v59 = vld [vmem:[%s0 + $0x118] sm:$0xff]
    %v60 = vld [vmem:[%s0 + $0x120] sm:$0xff]
    %v61 = vld [vmem:[%s0 + $0x128] sm:$0xff]
    %v62 = vld [vmem:[%s0 + $0x130] sm:$0xff]
    %v63 = vld [vmem:[%s0 + $0x138] sm:$0xff]
    %v64 = vld [vmem:[%s0 + $0x140] sm:$0xff]
    %v65 = vld [vmem:[%s0 + $0x148] sm:$0xff]
    %v66 = vld [vmem:[%s0 + $0x150] sm:$0xff]
    %v67 = vld [vmem:[%s0 + $0x158] sm:$0xff]
    %v68 = vld [vmem:[%s0 + $0x160] sm:$0xff]
    %v69 = vld [vmem:[%s0 + $0x168] sm:$0xff]
    %v70 = vld [vmem:[%s0 + $0x170] sm:$0xff]
    %v71 = vld [vmem:[%s0 + $0x178] sm:$0xff]
    %v72 = vld [vmem:[%s0 + $0x180] sm:$0xff]
    %v73 = vld [vmem:[%s0 + $0x188] sm:$0xff]
    %v74 = vld [vmem:[%s0 + $0x190] sm:$0xff]
    %v75 = vld [vmem:[%s0 + $0x198] sm:$0xff]
    %v76 = vld [vmem:[%s0 + $0x1a0] sm:$0xff]
    %v77 = vld [vmem:[%s0 + $0x1a8] sm:$0xff]
    %v78 = vld [vmem:[%s0 + $0x1b0] sm:$0xff]
    %v79 = vld [vmem:[%s0 + $0x1b8] sm:$0xff]
    %v80 = vld [vmem:[%s0 + $0x1c0] sm:$0xff]
    %v81 = vld [vmem:[%s0 + $0x1c8] sm:$0xff]
    %v82 = vld [vmem:[%s0 + $0x1d0] sm:$0xff]
    %v83 = vld [vmem:[%s0 + $0x1d8] sm:$0xff]
    %v84 = vld [vmem:[%s0 + $0x1e0] sm:$0xff]
    %v85 = vld [vmem:[%s0 + $0x1e8] sm:$0xff]
    %v86 = vld [vmem:[%s0 + $0x1f0] sm:$0xff]
    %v87 = vld [vmem:[%s0 + $0x1f8] sm:$0xff]
    %v88 = vld [vmem:[%s1] sm:$0xff]
    %v89 = vld [vmem:[%s1 + $0x8] sm:$0xff]
    %v90 = vld [vmem:[%s1 + $0x10] sm:$0xff]
    %v91 = vld [vmem:[%s1 + $0x18] sm:$0xff]
    %v92 = vld [vmem:[%s1 + $0x20] sm:$0xf]
    %v93 = vld [vmem:[%s2] sm:$0x1]
    %v95 = vlaneseq
    %v96 = vshrl.u32 %v95, 7
    %v97 = vsub.s32 0, %v96
    %v98 = vrot.slane %v93, %v97
    %vm100 = vcmask 293888
    %v102 = vsel %vm100, %v24, 0
    %v105 = vsel %vm100, %v25, 0
    %v108 = vsel %vm100, %v26, 0
    %v111 = vsel %vm100, %v27, 0
    %v114 = vsel %vm100, %v28, 0
    %v117 = vsel %vm100, %v29, 0
    %v120 = vsel %vm100, %v30, 0
    %v123 = vsel %vm100, %v31, 0
    %v126 = vsel %vm100, %v32, 0
    %v129 = vsel %vm100, %v33, 0
    %v132 = vsel %vm100, %v34, 0
    %v135 = vsel %vm100, %v35, 0
    %v138 = vsel %vm100, %v36, 0
    %v141 = vsel %vm100, %v37, 0
    %v144 = vsel %vm100, %v38, 0
    %v147 = vsel %vm100, %v39, 0
    %v150 = vsel %vm100, %v40, 0
    %v153 = vsel %vm100, %v41, 0
    %v156 = vsel %vm100, %v42, 0
    %v159 = vsel %vm100, %v43, 0
    %v162 = vsel %vm100, %v44, 0
    %v165 = vsel %vm100, %v45, 0
    %v168 = vsel %vm100, %v46, 0
    %v171 = vsel %vm100, %v47, 0
    %v174 = vsel %vm100, %v48, 0
    %v177 = vsel %vm100, %v49, 0
    %v180 = vsel %vm100, %v50, 0
    %v183 = vsel %vm100, %v51, 0
    %v186 = vsel %vm100, %v52, 0
    %v189 = vsel %vm100, %v53, 0
    %v192 = vsel %vm100, %v54, 0
    %v195 = vsel %vm100, %v55, 0
    %v198 = vsel %vm100, %v56, 0
    %v201 = vsel %vm100, %v57, 0
    %v204 = vsel %vm100, %v58, 0
    %v207 = vsel %vm100, %v59, 0
    %v210 = vsel %vm100, %v60, 0
    %v213 = vsel %vm100, %v61, 0
    %v216 = vsel %vm100, %v62, 0
    %v219 = vsel %vm100, %v63, 0
    %v222 = vsel %vm100, %v64, 0
    %v225 = vsel %vm100, %v65, 0
    %v228 = vsel %vm100, %v66, 0
    %v231 = vsel %vm100, %v67, 0
    %v234 = vsel %vm100, %v68, 0
    %v237 = vsel %vm100, %v69, 0
    %v240 = vsel %vm100, %v70, 0
    %v243 = vsel %vm100, %v71, 0
    %v246 = vsel %vm100, %v72, 0
    %v249 = vsel %vm100, %v73, 0
    %v252 = vsel %vm100, %v74, 0
    %v255 = vsel %vm100, %v75, 0
    %v258 = vsel %vm100, %v76, 0
    %v261 = vsel %vm100, %v77, 0
    %v264 = vsel %vm100, %v78, 0
    %v267 = vsel %vm100, %v79, 0
    %v270 = vsel %vm100, %v80, 0
    %v273 = vsel %vm100, %v81, 0
    %v276 = vsel %vm100, %v82, 0
    %v279 = vsel %vm100, %v83, 0
    %v282 = vsel %vm100, %v84, 0
    %v285 = vsel %vm100, %v85, 0
    %v288 = vsel %vm100, %v86, 0
    %v291 = vsel %vm100, %v87, 0
    %vm293 = vcmask 1043456
    %v295 = vsel %vm293, %v92, 0
    %297 = vmatprep.subr.mxu0 0.0
    %298 = vmatpush1.msra.mxu0 0.0
    %299 = vmatprep.subr.mxu0 0.0
    %300 = vmatpush1.msra.mxu0 0.0
    %301 = vmatprep.subr.mxu0 0.0
    %302 = vmatpush1.msra.mxu0 0.0
    %303 = vmatprep.subr.mxu0 0.0
    %304 = vmatpush1.msra.mxu0 0.0
    %305 = vmatprep.subr.mxu0 0.0
    %306 = vmatpush1.msra.mxu0 0.0
    %307 = vmatprep.subr.mxu0 0.0
    %308 = vmatpush1.msra.mxu0 0.0
    %309 = vmatprep.subr.mxu0 0.0
    %310 = vmatpush1.msra.mxu0 0.0
    %311 = vmatprep.subr.mxu0 0.0
    %312 = vmatpush1.msra.mxu0 0.0
    %313 = vmatprep.subr.mxu0 0.0
    %314 = vmatpush1.msra.mxu0 0.0
    %315 = vmatprep.subr.mxu0 0.0
    %316 = vmatpush1.msra.mxu0 0.0
    %317 = vmatprep.subr.mxu0 0.0
    %318 = vmatpush1.msra.mxu0 0.0
    %319 = vmatprep.subr.mxu0 0.0
    %320 = vmatpush1.msra.mxu0 %v295
    %321 = vmatprep.subr.mxu0 0.0
    %322 = vmatpush1.msra.mxu0 %v91
    %323 = vmatprep.subr.mxu0 0.0
    %324 = vmatpush1.msra.mxu0 %v90
    %325 = vmatprep.subr.mxu0 0.0
    %326 = vmatpush1.msra.mxu0 %v89
    %327 = vmatprep.subr.mxu0 0.0
    %328 = vmatpush1.msra.mxu0 %v88
    %329 = vmatprep.subr.mxu0 0.0
    %330 = vmatpush2.msra.mxu0 0.0
    %331 = vmatprep.subr.mxu0 0.0
    %332 = vmatpush2.msra.mxu0 0.0
    %333 = vmatprep.subr.mxu0 0.0
    %334 = vmatpush2.msra.mxu0 0.0
    %335 = vmatprep.subr.mxu0 0.0
    %336 = vmatpush2.msra.mxu0 0.0
    %337 = vmatprep.subr.mxu0 0.0
    %338 = vmatpush2.msra.mxu0 0.0
    %339 = vmatprep.subr.mxu0 0.0
    %340 = vmatpush2.msra.mxu0 0.0
    %341 = vmatprep.subr.mxu0 0.0
    %342 = vmatpush2.msra.mxu0 0.0
    %343 = vmatprep.subr.mxu0 0.0
    %344 = vmatpush2.msra.mxu0 0.0
    %345 = vmatprep.subr.mxu0 0.0
    %346 = vmatpush2.msra.mxu0 0.0
    %347 = vmatprep.subr.mxu0 0.0
    %348 = vmatpush2.msra.mxu0 0.0
    %349 = vmatprep.subr.mxu0 0.0
    %350 = vmatpush2.msra.mxu0 0.0
    %351 = vmatprep.subr.mxu0 0.0
    %352 = vmatpush2.msra.mxu0 0.0
    %353 = vmatprep.subr.mxu0 0.0
    %354 = vmatpush2.msra.mxu0 0.0
    %355 = vmatprep.subr.mxu0 0.0
    %356 = vmatpush2.msra.mxu0 0.0
    %357 = vmatprep.subr.mxu0 0.0
    %358 = vmatpush2.msra.mxu0 0.0
    %359 = vmatprep.subr.mxu0 0.0
    %360 = vmatpush2.msra.mxu0 0.0
    %361 = vmatprep.mubr.f32.mxu0 0.0
    %362 = vmatmul.mubr.f32.gmra.mxu0 %v102
    %v363 = vpop.f32.mrf.mxu0
    %v364 = vadd.f32 %v98, %v363
    %v365 = vpop.f32.mrf.mxu0
    %366 = vmatprep.mubr.f32.mxu0 0.0
    %367 = vmatmul.mubr.f32.gmra.mxu0 %v105
    %v368 = vpop.f32.mrf.mxu0
    %v369 = vadd.f32 %v98, %v368
    %v370 = vpop.f32.mrf.mxu0
    %371 = vmatprep.mubr.f32.mxu0 0.0
    %372 = vmatmul.mubr.f32.gmra.mxu0 %v108
    %v373 = vpop.f32.mrf.mxu0
    %v374 = vadd.f32 %v98, %v373
    %v375 = vpop.f32.mrf.mxu0
    %376 = vmatprep.mubr.f32.mxu0 0.0
    %377 = vmatmul.mubr.f32.gmra.mxu0 %v111
    %v378 = vpop.f32.mrf.mxu0
    %v379 = vadd.f32 %v98, %v378
    %v380 = vpop.f32.mrf.mxu0
    %381 = vmatprep.mubr.f32.mxu0 0.0
    %382 = vmatmul.mubr.f32.gmra.mxu0 %v114
    %v383 = vpop.f32.mrf.mxu0
    %v384 = vadd.f32 %v98, %v383
    %v385 = vpop.f32.mrf.mxu0
    %386 = vmatprep.mubr.f32.mxu0 0.0
    %387 = vmatmul.mubr.f32.gmra.mxu0 %v117
    %v388 = vpop.f32.mrf.mxu0
    %v389 = vadd.f32 %v98, %v388
    %v390 = vpop.f32.mrf.mxu0
    %391 = vmatprep.mubr.f32.mxu0 0.0
    %392 = vmatmul.mubr.f32.gmra.mxu0 %v120
    %v393 = vpop.f32.mrf.mxu0
    %v394 = vadd.f32 %v98, %v393
    %v395 = vpop.f32.mrf.mxu0
    %396 = vmatprep.mubr.f32.mxu0 0.0
    %397 = vmatmul.mubr.f32.gmra.mxu0 %v123
    %v398 = vpop.f32.mrf.mxu0
    %v399 = vadd.f32 %v98, %v398
    %v400 = vpop.f32.mrf.mxu0
    %401 = vmatprep.mubr.f32.mxu0 0.0
    %402 = vmatmul.mubr.f32.gmra.mxu0 %v126
    %v403 = vpop.f32.mrf.mxu0
    %v404 = vadd.f32 %v98, %v403
    %v405 = vpop.f32.mrf.mxu0
    %406 = vmatprep.mubr.f32.mxu0 0.0
    %407 = vmatmul.mubr.f32.gmra.mxu0 %v129
    %v408 = vpop.f32.mrf.mxu0
    %v409 = vadd.f32 %v98, %v408
    %v410 = vpop.f32.mrf.mxu0
    %411 = vmatprep.mubr.f32.mxu0 0.0
    %412 = vmatmul.mubr.f32.gmra.mxu0 %v132
    %v413 = vpop.f32.mrf.mxu0
    %v414 = vadd.f32 %v98, %v413
    %v415 = vpop.f32.mrf.mxu0
    %416 = vmatprep.mubr.f32.mxu0 0.0
    %417 = vmatmul.mubr.f32.gmra.mxu0 %v135
    %v418 = vpop.f32.mrf.mxu0
    %v419 = vadd.f32 %v98, %v418
    %v420 = vpop.f32.mrf.mxu0
    %421 = vmatprep.mubr.f32.mxu0 0.0
    %422 = vmatmul.mubr.f32.gmra.mxu0 %v138
    %v423 = vpop.f32.mrf.mxu0
    %v424 = vadd.f32 %v98, %v423
    %v425 = vpop.f32.mrf.mxu0
    %426 = vmatprep.mubr.f32.mxu0 0.0
    %427 = vmatmul.mubr.f32.gmra.mxu0 %v141
    %v428 = vpop.f32.mrf.mxu0
    %v429 = vadd.f32 %v98, %v428
    %v430 = vpop.f32.mrf.mxu0
    %431 = vmatprep.mubr.f32.mxu0 0.0
    %432 = vmatmul.mubr.f32.gmra.mxu0 %v144
    %v433 = vpop.f32.mrf.mxu0
    %v434 = vadd.f32 %v98, %v433
    %v435 = vpop.f32.mrf.mxu0
    %436 = vmatprep.mubr.f32.mxu0 0.0
    %437 = vmatmul.mubr.f32.gmra.mxu0 %v147
    %v438 = vpop.f32.mrf.mxu0
    %v439 = vadd.f32 %v98, %v438
    %v440 = vpop.f32.mrf.mxu0
    %441 = vmatprep.mubr.f32.mxu0 0.0
    %442 = vmatmul.mubr.f32.gmra.mxu0 %v150
    %v443 = vpop.f32.mrf.mxu0
    %v444 = vadd.f32 %v98, %v443
    %v445 = vpop.f32.mrf.mxu0
    %446 = vmatprep.mubr.f32.mxu0 0.0
    %447 = vmatmul.mubr.f32.gmra.mxu0 %v153
    %v448 = vpop.f32.mrf.mxu0
    %v449 = vadd.f32 %v98, %v448
    %v450 = vpop.f32.mrf.mxu0
    %451 = vmatprep.mubr.f32.mxu0 0.0
    %452 = vmatmul.mubr.f32.gmra.mxu0 %v156
    %v453 = vpop.f32.mrf.mxu0
    %v454 = vadd.f32 %v98, %v453
    %v455 = vpop.f32.mrf.mxu0
    %456 = vmatprep.mubr.f32.mxu0 0.0
    %457 = vmatmul.mubr.f32.gmra.mxu0 %v159
    %v458 = vpop.f32.mrf.mxu0
    %v459 = vadd.f32 %v98, %v458
    %v460 = vpop.f32.mrf.mxu0
    %461 = vmatprep.mubr.f32.mxu0 0.0
    %462 = vmatmul.mubr.f32.gmra.mxu0 %v162
    %v463 = vpop.f32.mrf.mxu0
    %v464 = vadd.f32 %v98, %v463
    %v465 = vpop.f32.mrf.mxu0
    %466 = vmatprep.mubr.f32.mxu0 0.0
    %467 = vmatmul.mubr.f32.gmra.mxu0 %v165
    %v468 = vpop.f32.mrf.mxu0
    %v469 = vadd.f32 %v98, %v468
    %v470 = vpop.f32.mrf.mxu0
    %471 = vmatprep.mubr.f32.mxu0 0.0
    %472 = vmatmul.mubr.f32.gmra.mxu0 %v168
    %v473 = vpop.f32.mrf.mxu0
    %v474 = vadd.f32 %v98, %v473
    %v475 = vpop.f32.mrf.mxu0
    %476 = vmatprep.mubr.f32.mxu0 0.0
    %477 = vmatmul.mubr.f32.gmra.mxu0 %v171
    %v478 = vpop.f32.mrf.mxu0
    %v479 = vadd.f32 %v98, %v478
    %v480 = vpop.f32.mrf.mxu0
    %481 = vmatprep.mubr.f32.mxu0 0.0
    %482 = vmatmul.mubr.f32.gmra.mxu0 %v174
    %v483 = vpop.f32.mrf.mxu0
    %v484 = vadd.f32 %v98, %v483
    %v485 = vpop.f32.mrf.mxu0
    %486 = vmatprep.mubr.f32.mxu0 0.0
    %487 = vmatmul.mubr.f32.gmra.mxu0 %v177
    %v488 = vpop.f32.mrf.mxu0
    %v489 = vadd.f32 %v98, %v488
    %v490 = vpop.f32.mrf.mxu0
    %491 = vmatprep.mubr.f32.mxu0 0.0
    %492 = vmatmul.mubr.f32.gmra.mxu0 %v180
    %v493 = vpop.f32.mrf.mxu0
    %v494 = vadd.f32 %v98, %v493
    %v495 = vpop.f32.mrf.mxu0
    %496 = vmatprep.mubr.f32.mxu0 0.0
    %497 = vmatmul.mubr.f32.gmra.mxu0 %v183
    %v498 = vpop.f32.mrf.mxu0
    %v499 = vadd.f32 %v98, %v498
    %v500 = vpop.f32.mrf.mxu0
    %501 = vmatprep.mubr.f32.mxu0 0.0
    %502 = vmatmul.mubr.f32.gmra.mxu0 %v186
    %v503 = vpop.f32.mrf.mxu0
    %v504 = vadd.f32 %v98, %v503
    %v505 = vpop.f32.mrf.mxu0
    %506 = vmatprep.mubr.f32.mxu0 0.0
    %507 = vmatmul.mubr.f32.gmra.mxu0 %v189
    %v508 = vpop.f32.mrf.mxu0
    %v509 = vadd.f32 %v98, %v508
    %v510 = vpop.f32.mrf.mxu0
    %511 = vmatprep.mubr.f32.mxu0 0.0
    %512 = vmatmul.mubr.f32.gmra.mxu0 %v192
    %v513 = vpop.f32.mrf.mxu0
    %v514 = vadd.f32 %v98, %v513
    %v515 = vpop.f32.mrf.mxu0
    %516 = vmatprep.mubr.f32.mxu0 0.0
    %517 = vmatmul.mubr.f32.gmra.mxu0 %v195
    %v518 = vpop.f32.mrf.mxu0
    %v519 = vadd.f32 %v98, %v518
    %v520 = vpop.f32.mrf.mxu0
    %521 = vmatprep.mubr.f32.mxu0 0.0
    %522 = vmatmul.mubr.f32.gmra.mxu0 %v198
    %v523 = vpop.f32.mrf.mxu0
    %v524 = vadd.f32 %v98, %v523
    %v525 = vpop.f32.mrf.mxu0
    %526 = vmatprep.mubr.f32.mxu0 0.0
    %527 = vmatmul.mubr.f32.gmra.mxu0 %v201
    %v528 = vpop.f32.mrf.mxu0
    %v529 = vadd.f32 %v98, %v528
    %v530 = vpop.f32.mrf.mxu0
    %531 = vmatprep.mubr.f32.mxu0 0.0
    %532 = vmatmul.mubr.f32.gmra.mxu0 %v204
    %v533 = vpop.f32.mrf.mxu0
    %v534 = vadd.f32 %v98, %v533
    %v535 = vpop.f32.mrf.mxu0
    %536 = vmatprep.mubr.f32.mxu0 0.0
    %537 = vmatmul.mubr.f32.gmra.mxu0 %v207
    %v538 = vpop.f32.mrf.mxu0
    %v539 = vadd.f32 %v98, %v538
    %v540 = vpop.f32.mrf.mxu0
    %541 = vmatprep.mubr.f32.mxu0 0.0
    %542 = vmatmul.mubr.f32.gmra.mxu0 %v210
    %v543 = vpop.f32.mrf.mxu0
    %v544 = vadd.f32 %v98, %v543
    %v545 = vpop.f32.mrf.mxu0
    %546 = vmatprep.mubr.f32.mxu0 0.0
    %547 = vmatmul.mubr.f32.gmra.mxu0 %v213
    %v548 = vpop.f32.mrf.mxu0
    %v549 = vadd.f32 %v98, %v548
    %v550 = vpop.f32.mrf.mxu0
    %551 = vmatprep.mubr.f32.mxu0 0.0
    %552 = vmatmul.mubr.f32.gmra.mxu0 %v216
    %v553 = vpop.f32.mrf.mxu0
    %v554 = vadd.f32 %v98, %v553
    %v555 = vpop.f32.mrf.mxu0
    %556 = vmatprep.mubr.f32.mxu0 0.0
    %557 = vmatmul.mubr.f32.gmra.mxu0 %v219
    %v558 = vpop.f32.mrf.mxu0
    %v559 = vadd.f32 %v98, %v558
    %v560 = vpop.f32.mrf.mxu0
    %561 = vmatprep.mubr.f32.mxu0 0.0
    %562 = vmatmul.mubr.f32.gmra.mxu0 %v222
    %v563 = vpop.f32.mrf.mxu0
    %v564 = vadd.f32 %v98, %v563
    %v565 = vpop.f32.mrf.mxu0
    %566 = vmatprep.mubr.f32.mxu0 0.0
    %567 = vmatmul.mubr.f32.gmra.mxu0 %v225
    %v568 = vpop.f32.mrf.mxu0
    %v569 = vadd.f32 %v98, %v568
    %v570 = vpop.f32.mrf.mxu0
    %571 = vmatprep.mubr.f32.mxu0 0.0
    %572 = vmatmul.mubr.f32.gmra.mxu0 %v228
    %v573 = vpop.f32.mrf.mxu0
    %v574 = vadd.f32 %v98, %v573
    %v575 = vpop.f32.mrf.mxu0
    %576 = vmatprep.mubr.f32.mxu0 0.0
    %577 = vmatmul.mubr.f32.gmra.mxu0 %v231
    %v578 = vpop.f32.mrf.mxu0
    %v579 = vadd.f32 %v98, %v578
    %v580 = vpop.f32.mrf.mxu0
    %581 = vmatprep.mubr.f32.mxu0 0.0
    %582 = vmatmul.mubr.f32.gmra.mxu0 %v234
    %v583 = vpop.f32.mrf.mxu0
    %v584 = vadd.f32 %v98, %v583
    %v585 = vpop.f32.mrf.mxu0
    %586 = vmatprep.mubr.f32.mxu0 0.0
    %587 = vmatmul.mubr.f32.gmra.mxu0 %v237
    %v588 = vpop.f32.mrf.mxu0
    %v589 = vadd.f32 %v98, %v588
    %v590 = vpop.f32.mrf.mxu0
    %591 = vmatprep.mubr.f32.mxu0 0.0
    %592 = vmatmul.mubr.f32.gmra.mxu0 %v240
    %v593 = vpop.f32.mrf.mxu0
    %v594 = vadd.f32 %v98, %v593
    %v595 = vpop.f32.mrf.mxu0
    %596 = vmatprep.mubr.f32.mxu0 0.0
    %597 = vmatmul.mubr.f32.gmra.mxu0 %v243
    %v598 = vpop.f32.mrf.mxu0
    %v599 = vadd.f32 %v98, %v598
    %v600 = vpop.f32.mrf.mxu0
    %601 = vmatprep.mubr.f32.mxu0 0.0
    %602 = vmatmul.mubr.f32.gmra.mxu0 %v246
    %v603 = vpop.f32.mrf.mxu0
    %v604 = vadd.f32 %v98, %v603
    %v605 = vpop.f32.mrf.mxu0
    %606 = vmatprep.mubr.f32.mxu0 0.0
    %607 = vmatmul.mubr.f32.gmra.mxu0 %v249
    %v608 = vpop.f32.mrf.mxu0
    %v609 = vadd.f32 %v98, %v608
    %v610 = vpop.f32.mrf.mxu0
    %611 = vmatprep.mubr.f32.mxu0 0.0
    %612 = vmatmul.mubr.f32.gmra.mxu0 %v252
    %v613 = vpop.f32.mrf.mxu0
    %v614 = vadd.f32 %v98, %v613
    %v615 = vpop.f32.mrf.mxu0
    %616 = vmatprep.mubr.f32.mxu0 0.0
    %617 = vmatmul.mubr.f32.gmra.mxu0 %v255
    %v618 = vpop.f32.mrf.mxu0
    %v619 = vadd.f32 %v98, %v618
    %v620 = vpop.f32.mrf.mxu0
    %621 = vmatprep.mubr.f32.mxu0 0.0
    %622 = vmatmul.mubr.f32.gmra.mxu0 %v258
    %v623 = vpop.f32.mrf.mxu0
    %v624 = vadd.f32 %v98, %v623
    %v625 = vpop.f32.mrf.mxu0
    %626 = vmatprep.mubr.f32.mxu0 0.0
    %627 = vmatmul.mubr.f32.gmra.mxu0 %v261
    %v628 = vpop.f32.mrf.mxu0
    %v629 = vadd.f32 %v98, %v628
    %v630 = vpop.f32.mrf.mxu0
    %631 = vmatprep.mubr.f32.mxu0 0.0
    %632 = vmatmul.mubr.f32.gmra.mxu0 %v264
    %v633 = vpop.f32.mrf.mxu0
    %v634 = vadd.f32 %v98, %v633
    %v635 = vpop.f32.mrf.mxu0
    %636 = vmatprep.mubr.f32.mxu0 0.0
    %637 = vmatmul.mubr.f32.gmra.mxu0 %v267
    %v638 = vpop.f32.mrf.mxu0
    %v639 = vadd.f32 %v98, %v638
    %v640 = vpop.f32.mrf.mxu0
    %641 = vmatprep.mubr.f32.mxu0 0.0
    %642 = vmatmul.mubr.f32.gmra.mxu0 %v270
    %v643 = vpop.f32.mrf.mxu0
    %v644 = vadd.f32 %v98, %v643
    %v645 = vpop.f32.mrf.mxu0
    %646 = vmatprep.mubr.f32.mxu0 0.0
    %647 = vmatmul.mubr.f32.gmra.mxu0 %v273
    %v648 = vpop.f32.mrf.mxu0
    %v649 = vadd.f32 %v98, %v648
    %v650 = vpop.f32.mrf.mxu0
    %651 = vmatprep.mubr.f32.mxu0 0.0
    %652 = vmatmul.mubr.f32.gmra.mxu0 %v276
    %v653 = vpop.f32.mrf.mxu0
    %v654 = vadd.f32 %v98, %v653
    %v655 = vpop.f32.mrf.mxu0
    %656 = vmatprep.mubr.f32.mxu0 0.0
    %657 = vmatmul.mubr.f32.gmra.mxu0 %v279
    %v658 = vpop.f32.mrf.mxu0
    %v659 = vadd.f32 %v98, %v658
    %v660 = vpop.f32.mrf.mxu0
    %661 = vmatprep.mubr.f32.mxu0 0.0
    %662 = vmatmul.mubr.f32.gmra.mxu0 %v282
    %v663 = vpop.f32.mrf.mxu0
    %v664 = vadd.f32 %v98, %v663
    %v665 = vpop.f32.mrf.mxu0
    %666 = vmatprep.mubr.f32.mxu0 0.0
    %667 = vmatmul.mubr.f32.gmra.mxu0 %v285
    %v668 = vpop.f32.mrf.mxu0
    %v669 = vadd.f32 %v98, %v668
    %v670 = vpop.f32.mrf.mxu0
    %671 = vmatprep.mubr.f32.mxu0 0.0
    %672 = vmatmul.mubr.f32.gmra.mxu0 %v288
    %v673 = vpop.f32.mrf.mxu0
    %v674 = vadd.f32 %v98, %v673
    %v675 = vpop.f32.mrf.mxu0
    %676 = vmatprep.mubr.f32.mxu0 0.0
    %677 = vmatmul.mubr.f32.gmra.mxu0 %v291
    %v678 = vpop.f32.mrf.mxu0
    %v679 = vadd.f32 %v98, %v678
    %v680 = vpop.f32.mrf.mxu0
    %681 = vdwg.mxu0
    %v682 = vmax.f32 %v364, 0.0
    %v683 = vmax.f32 %v369, 0.0
    %v684 = vmax.f32 %v374, 0.0
    %v685 = vmax.f32 %v379, 0.0
    %v686 = vmax.f32 %v384, 0.0
    %v687 = vmax.f32 %v389, 0.0
    %v688 = vmax.f32 %v394, 0.0
    %v689 = vmax.f32 %v399, 0.0
    %v690 = vmax.f32 %v404, 0.0
    %v691 = vmax.f32 %v409, 0.0
    %v692 = vmax.f32 %v414, 0.0
    %v693 = vmax.f32 %v419, 0.0
    %v694 = vmax.f32 %v424, 0.0
    %v695 = vmax.f32 %v429, 0.0
    %v696 = vmax.f32 %v434, 0.0
    %v697 = vmax.f32 %v439, 0.0
    %v698 = vmax.f32 %v444, 0.0
    %v699 = vmax.f32 %v449, 0.0
    %v700 = vmax.f32 %v454, 0.0
    %v701 = vmax.f32 %v459, 0.0
    %v702 = vmax.f32 %v464, 0.0
    %v703 = vmax.f32 %v469, 0.0
    %v704 = vmax.f32 %v474, 0.0
    %v705 = vmax.f32 %v479, 0.0
    %v706 = vmax.f32 %v484, 0.0
    %v707 = vmax.f32 %v489, 0.0
    %v708 = vmax.f32 %v494, 0.0
    %v709 = vmax.f32 %v499, 0.0
    %v710 = vmax.f32 %v504, 0.0
    %v711 = vmax.f32 %v509, 0.0
    %v712 = vmax.f32 %v514, 0.0
    %v713 = vmax.f32 %v519, 0.0
    %v714 = vmax.f32 %v524, 0.0
    %v715 = vmax.f32 %v529, 0.0
    %v716 = vmax.f32 %v534, 0.0
    %v717 = vmax.f32 %v539, 0.0
    %v718 = vmax.f32 %v544, 0.0
    %v719 = vmax.f32 %v549, 0.0
    %v720 = vmax.f32 %v554, 0.0
    %v721 = vmax.f32 %v559, 0.0
    %v722 = vmax.f32 %v564, 0.0
    %v723 = vmax.f32 %v569, 0.0
    %v724 = vmax.f32 %v574, 0.0
    %v725 = vmax.f32 %v579, 0.0
    %v726 = vmax.f32 %v584, 0.0
    %v727 = vmax.f32 %v589, 0.0
    %v728 = vmax.f32 %v594, 0.0
    %v729 = vmax.f32 %v599, 0.0
    %v730 = vmax.f32 %v604, 0.0
    %v731 = vmax.f32 %v609, 0.0
    %v732 = vmax.f32 %v614, 0.0
    %v733 = vmax.f32 %v619, 0.0
    %v734 = vmax.f32 %v624, 0.0
    %v735 = vmax.f32 %v629, 0.0
    %v736 = vmax.f32 %v634, 0.0
    %v737 = vmax.f32 %v639, 0.0
    %v738 = vmax.f32 %v644, 0.0
    %v739 = vmax.f32 %v649, 0.0
    %v740 = vmax.f32 %v654, 0.0
    %v741 = vmax.f32 %v659, 0.0
    %v742 = vmax.f32 %v664, 0.0
    %v743 = vmax.f32 %v669, 0.0
    %v744 = vmax.f32 %v674, 0.0
    %v745 = vmax.f32 %v679, 0.0
    %v746 = vld [vmem:[%s3] sm:$0xff]
    %v748 = vcombine.high %v746, %v746
    %v750 = vunpack.c.l.s4 1983009808
    %v751 = vunpack.c.0.s8 %v750
    %v752 = vlaneseq
    %v753 = vshrl.u32 %v752, 7
    %v754 = vsub.s32 %v751, %v753
    %v755 = vrot.slane %v746, %v754
    %v757 = vunpack.c.l.s4 1983009808
    %v758 = vunpack.c.0.s8 %v757
    %v759 = vlaneseq
    %v760 = vshrl.u32 %v759, 7
    %v761 = vsub.s32 %v758, %v760
    %v762 = vrot.slane %v748, %v761
    %v763 = vcombine.high %v755, %v755
    %v764 = vcombine.high %v762, %v762
    %769 = vmatprep.subr.mxu0 0.0
    %770 = vmatpush1.msra.mxu0 %v697
    %771 = vmatprep.subr.mxu0 0.0
    %772 = vmatpush1.msra.mxu0 %v696
    %773 = vmatprep.subr.mxu0 0.0
    %774 = vmatpush1.msra.mxu0 %v695
    %775 = vmatprep.subr.mxu0 0.0
    %776 = vmatpush1.msra.mxu0 %v694
    %777 = vmatprep.subr.mxu0 0.0
    %778 = vmatpush1.msra.mxu0 %v693
    %779 = vmatprep.subr.mxu0 0.0
    %780 = vmatpush1.msra.mxu0 %v692
    %781 = vmatprep.subr.mxu0 0.0
    %782 = vmatpush1.msra.mxu0 %v691
    %783 = vmatprep.subr.mxu0 0.0
    %784 = vmatpush1.msra.mxu0 %v690
    %785 = vmatprep.subr.mxu0 0.0
    %786 = vmatpush1.msra.mxu0 %v689
    %787 = vmatprep.subr.mxu0 0.0
    %788 = vmatpush1.msra.mxu0 %v688
    %789 = vmatprep.subr.mxu0 0.0
    %790 = vmatpush1.msra.mxu0 %v687
    %791 = vmatprep.subr.mxu0 0.0
    %792 = vmatpush1.msra.mxu0 %v686
    %793 = vmatprep.subr.mxu0 0.0
    %794 = vmatpush1.msra.mxu0 %v685
    %795 = vmatprep.subr.mxu0 0.0
    %796 = vmatpush1.msra.mxu0 %v684
    %797 = vmatprep.subr.mxu0 0.0
    %798 = vmatpush1.msra.mxu0 %v683
    %799 = vmatprep.subr.mxu0 0.0
    %800 = vmatpush1.msra.mxu0 %v682
    %801 = vmatprep.subr.mxu0 0.0
    %802 = vmatpush2.msra.mxu0 %v713
    %803 = vmatprep.subr.mxu0 0.0
    %804 = vmatpush2.msra.mxu0 %v712
    %805 = vmatprep.subr.mxu0 0.0
    %806 = vmatpush2.msra.mxu0 %v711
    %807 = vmatprep.subr.mxu0 0.0
    %808 = vmatpush2.msra.mxu0 %v710
    %809 = vmatprep.subr.mxu0 0.0
    %810 = vmatpush2.msra.mxu0 %v709
    %811 = vmatprep.subr.mxu0 0.0
    %812 = vmatpush2.msra.mxu0 %v708
    %813 = vmatprep.subr.mxu0 0.0
    %814 = vmatpush2.msra.mxu0 %v707
    %815 = vmatprep.subr.mxu0 0.0
    %816 = vmatpush2.msra.mxu0 %v706
    %817 = vmatprep.subr.mxu0 0.0
    %818 = vmatpush2.msra.mxu0 %v705
    %819 = vmatprep.subr.mxu0 0.0
    %820 = vmatpush2.msra.mxu0 %v704
    %821 = vmatprep.subr.mxu0 0.0
    %822 = vmatpush2.msra.mxu0 %v703
    %823 = vmatprep.subr.mxu0 0.0
    %824 = vmatpush2.msra.mxu0 %v702
    %825 = vmatprep.subr.mxu0 0.0
    %826 = vmatpush2.msra.mxu0 %v701
    %827 = vmatprep.subr.mxu0 0.0
    %828 = vmatpush2.msra.mxu0 %v700
    %829 = vmatprep.subr.mxu0 0.0
    %830 = vmatpush2.msra.mxu0 %v699
    %831 = vmatprep.subr.mxu0 0.0
    %832 = vmatpush2.msra.mxu0 %v698
    %833 = vmatprep.mubr.f32.mxu0 %v763
    %834 = vmatmul.mubr.f32.gmra.mxu0 %v755
    %v835 = vpop.f32.mrf.mxu0
    %v836 = vadd.f32 0.0, %v835
    %v837 = vpop.f32.mrf.mxu0
    %838 = vdwg.mxu0
    %839 = vmatprep.subr.mxu0 0.0
    %840 = vmatpush1.msra.mxu0 %v729
    %841 = vmatprep.subr.mxu0 0.0
    %842 = vmatpush1.msra.mxu0 %v728
    %843 = vmatprep.subr.mxu0 0.0
    %844 = vmatpush1.msra.mxu0 %v727
    %845 = vmatprep.subr.mxu0 0.0
    %846 = vmatpush1.msra.mxu0 %v726
    %847 = vmatprep.subr.mxu0 0.0
    %848 = vmatpush1.msra.mxu0 %v725
    %849 = vmatprep.subr.mxu0 0.0
    %850 = vmatpush1.msra.mxu0 %v724
    %851 = vmatprep.subr.mxu0 0.0
    %852 = vmatpush1.msra.mxu0 %v723
    %853 = vmatprep.subr.mxu0 0.0
    %854 = vmatpush1.msra.mxu0 %v722
    %855 = vmatprep.subr.mxu0 0.0
    %856 = vmatpush1.msra.mxu0 %v721
    %857 = vmatprep.subr.mxu0 0.0
    %858 = vmatpush1.msra.mxu0 %v720
    %859 = vmatprep.subr.mxu0 0.0
    %860 = vmatpush1.msra.mxu0 %v719
    %861 = vmatprep.subr.mxu0 0.0
    %862 = vmatpush1.msra.mxu0 %v718
    %863 = vmatprep.subr.mxu0 0.0
    %864 = vmatpush1.msra.mxu0 %v717
    %865 = vmatprep.subr.mxu0 0.0
    %866 = vmatpush1.msra.mxu0 %v716
    %867 = vmatprep.subr.mxu0 0.0
    %868 = vmatpush1.msra.mxu0 %v715
    %869 = vmatprep.subr.mxu0 0.0
    %870 = vmatpush1.msra.mxu0 %v714
    %871 = vmatprep.subr.mxu0 0.0
    %872 = vmatpush2.msra.mxu0 %v745
    %873 = vmatprep.subr.mxu0 0.0
    %874 = vmatpush2.msra.mxu0 %v744
    %875 = vmatprep.subr.mxu0 0.0
    %876 = vmatpush2.msra.mxu0 %v743
    %877 = vmatprep.subr.mxu0 0.0
    %878 = vmatpush2.msra.mxu0 %v742
    %879 = vmatprep.subr.mxu0 0.0
    %880 = vmatpush2.msra.mxu0 %v741
    %881 = vmatprep.subr.mxu0 0.0
    %882 = vmatpush2.msra.mxu0 %v740
    %883 = vmatprep.subr.mxu0 0.0
    %884 = vmatpush2.msra.mxu0 %v739
    %885 = vmatprep.subr.mxu0 0.0
    %886 = vmatpush2.msra.mxu0 %v738
    %887 = vmatprep.subr.mxu0 0.0
    %888 = vmatpush2.msra.mxu0 %v737
    %889 = vmatprep.subr.mxu0 0.0
    %890 = vmatpush2.msra.mxu0 %v736
    %891 = vmatprep.subr.mxu0 0.0
    %892 = vmatpush2.msra.mxu0 %v735
    %893 = vmatprep.subr.mxu0 0.0
    %894 = vmatpush2.msra.mxu0 %v734
    %895 = vmatprep.subr.mxu0 0.0
    %896 = vmatpush2.msra.mxu0 %v733
    %897 = vmatprep.subr.mxu0 0.0
    %898 = vmatpush2.msra.mxu0 %v732
    %899 = vmatprep.subr.mxu0 0.0
    %900 = vmatpush2.msra.mxu0 %v731
    %901 = vmatprep.subr.mxu0 0.0
    %902 = vmatpush2.msra.mxu0 %v730
    %903 = vmatprep.mubr.f32.mxu0 %v764
    %904 = vmatmul.mubr.f32.gmra.mxu0 %v762
    %v905 = vpop.f32.mrf.mxu0
    %v906 = vadd.f32 %v836, %v905
    %v907 = vpop.f32.mrf.mxu0
    %908 = vdwg.mxu0
    %v909 = vld [vmem:[%s4] sm:$0xff]
    %v910 = vld [vmem:[%s4 + $0x8] sm:$0xff]
    %v911 = vld [vmem:[%s4 + $0x10] sm:$0xff]
    %v912 = vld [vmem:[%s4 + $0x18] sm:$0xff]
    %v913 = vld [vmem:[%s5] sm:$0x1]
    %v915 = vlaneseq
    %v916 = vshrl.u32 %v915, 7
    %v917 = vsub.s32 0, %v916
    %v918 = vrot.slane %v913, %v917
    %vm920 = vcmask 261120
    %v922 = vsel %vm920, %v906, 0
    %924 = vmatprep.subr.mxu0 0.0
    %925 = vmatpush1.msra.mxu0 0.0
    %926 = vmatprep.subr.mxu0 0.0
    %927 = vmatpush1.msra.mxu0 0.0
    %928 = vmatprep.subr.mxu0 0.0
    %929 = vmatpush1.msra.mxu0 0.0
    %930 = vmatprep.subr.mxu0 0.0
    %931 = vmatpush1.msra.mxu0 0.0
    %932 = vmatprep.subr.mxu0 0.0
    %933 = vmatpush1.msra.mxu0 0.0
    %934 = vmatprep.subr.mxu0 0.0
    %935 = vmatpush1.msra.mxu0 0.0
    %936 = vmatprep.subr.mxu0 0.0
    %937 = vmatpush1.msra.mxu0 0.0
    %938 = vmatprep.subr.mxu0 0.0
    %939 = vmatpush1.msra.mxu0 0.0
    %940 = vmatprep.subr.mxu0 0.0
    %941 = vmatpush1.msra.mxu0 0.0
    %942 = vmatprep.subr.mxu0 0.0
    %943 = vmatpush1.msra.mxu0 0.0
    %944 = vmatprep.subr.mxu0 0.0
    %945 = vmatpush1.msra.mxu0 0.0
    %946 = vmatprep.subr.mxu0 0.0
    %947 = vmatpush1.msra.mxu0 0.0
    %948 = vmatprep.subr.mxu0 0.0
    %949 = vmatpush1.msra.mxu0 %v912
    %950 = vmatprep.subr.mxu0 0.0
    %951 = vmatpush1.msra.mxu0 %v911
    %952 = vmatprep.subr.mxu0 0.0
    %953 = vmatpush1.msra.mxu0 %v910
    %954 = vmatprep.subr.mxu0 0.0
    %955 = vmatpush1.msra.mxu0 %v909
    %956 = vmatprep.subr.mxu0 0.0
    %957 = vmatpush2.msra.mxu0 0.0
    %958 = vmatprep.subr.mxu0 0.0
    %959 = vmatpush2.msra.mxu0 0.0
    %960 = vmatprep.subr.mxu0 0.0
    %961 = vmatpush2.msra.mxu0 0.0
    %962 = vmatprep.subr.mxu0 0.0
    %963 = vmatpush2.msra.mxu0 0.0
    %964 = vmatprep.subr.mxu0 0.0
    %965 = vmatpush2.msra.mxu0 0.0
    %966 = vmatprep.subr.mxu0 0.0
    %967 = vmatpush2.msra.mxu0 0.0
    %968 = vmatprep.subr.mxu0 0.0
    %969 = vmatpush2.msra.mxu0 0.0
    %970 = vmatprep.subr.mxu0 0.0
    %971 = vmatpush2.msra.mxu0 0.0
    %972 = vmatprep.subr.mxu0 0.0
    %973 = vmatpush2.msra.mxu0 0.0
    %974 = vmatprep.subr.mxu0 0.0
    %975 = vmatpush2.msra.mxu0 0.0
    %976 = vmatprep.subr.mxu0 0.0
    %977 = vmatpush2.msra.mxu0 0.0
    %978 = vmatprep.subr.mxu0 0.0
    %979 = vmatpush2.msra.mxu0 0.0
    %980 = vmatprep.subr.mxu0 0.0
    %981 = vmatpush2.msra.mxu0 0.0
    %982 = vmatprep.subr.mxu0 0.0
    %983 = vmatpush2.msra.mxu0 0.0
    %984 = vmatprep.subr.mxu0 0.0
    %985 = vmatpush2.msra.mxu0 0.0
    %986 = vmatprep.subr.mxu0 0.0
    %987 = vmatpush2.msra.mxu0 0.0
    %988 = vmatprep.mubr.f32.mxu0 0.0
    %989 = vmatmul.mubr.f32.gmra.mxu0 %v922
    %v990 = vpop.f32.mrf.mxu0
    %v991 = vadd.f32 %v918, %v990
    %v992 = vpop.f32.mrf.mxu0
    %993 = vdwg.mxu0
    %vm994 = vcmask 74752
    %995 = vst.msk [vmem:[#allocation2] sm:$0x3] %vm994, %v991
    // Predicated region
    $region26: #{extractor_head_forward.1} parent=1 // pred_check
      _
    $region27: #{extractor_head_forward.1} parent=1 // pred_check_branch
      %997 = sbr.rel (0) target = $region29
    $region28: #{extractor_head_forward.1} parent=1 // pred_region
      %s999 = ssub.s32 32, 32
      %1000 = vsyncadd [#allocation3], %s999
      %s1002 = sshll.u32 [#allocation2], 4
      %s1003 = int_to_ptr.vmem [resolvable:$true] %s1002
      %1005 = dma.vmem_to_hbm [thread:$0]  %s1003, 32, %s6, [#allocation3]
    $region29: #{extractor_head_forward.1} parent=1 // pred_fallthru
      _
    // Predicated region
    $region30: #{extractor_head_forward.1} parent=1 // pred_check
      _
    $region31: #{extractor_head_forward.1} parent=1 // pred_check_branch
      %1007 = sbr.rel (0) target = $region33
    $region32: #{extractor_head_forward.1} parent=1 // pred_region
      %1008 = dma.done [#allocation3], 32
    $region33: #{extractor_head_forward.1} parent=1 // pred_fallthru
      _
    %1009 = vsyncpa [#allocation3], 1

</llo_original>
